<compile_context>
chip_gen: v7x
topology: tpu7x:2x2x1
jax: 0.10.0
libtpu: 0.0.40
codegen_flags: <defaults>
</compile_context>

<pallas_src>
import jax
import jax.numpy as jnp
from jax.experimental import pallas as pl
from jax.experimental.pallas import tpu as pltpu


def _chomp_copy_kernel(x_ref, o_ref):
    # Dense (rows, lanes) tile copy. Because the chomp is a prefix slice,
    # the input and output block index maps are identical, so no slicing is
    # needed here; Pallas masks the partial edge tiles.
    o_ref[...] = x_ref[...]


def _round_up(x: int, m: int) -> int:
    return ((x + m - 1) // m) * m


# Per-buffer VMEM tile budget. 4 buffers live at once (in + out, each
# double-buffered) -> <= 8 MiB total, fits default scoped VMEM everywhere.
_TILE_BYTES = 2 * 1024 * 1024


def chomp1d(x: jax.Array, chomp_size: int) -> jax.Array:
    """Equivalent of Chomp1d(chomp_size).forward(x) for x of shape (N, C, L).

    Requires 0 < chomp_size < L (PyTorch's `:-0` would return an empty tensor;
    that degenerate case is rejected here).
    """
    n, c, l = x.shape
    assert 0 < chomp_size < l, "chomp_size must be in (0, L)"
    l_out = l - chomp_size

    # Flatten (N, C) -> rows so the copy is a dense 2-D tiled prefix slice.
    # x is contiguous NCL, so this reshape is a free metadata op.
    r = n * c
    x2 = x.reshape(r, l)

    # Sublane packing: 8 rows for 4-byte dtypes, 16 for 2-byte, 32 for 1-byte.
    itemsize = jnp.dtype(x.dtype).itemsize
    sublane = 8 * max(1, 4 // max(1, itemsize))

    # Lane tile: as wide as L_out allows, capped at 2048 lanes (keeps the row
    # tile >= 256 for f32 under the byte budget).
    l_tile = min(_round_up(l_out, 128), 2048)

    # Row tile: fill the remaining byte budget, rounded to the sublane packing.
    max_rows = max(sublane, (_TILE_BYTES // (l_tile * itemsize)) // sublane * sublane)
    r_tile = min(_round_up(r, sublane), max_rows)

    grid = (pl.cdiv(r, r_tile), pl.cdiv(l_out, l_tile))

    out2 = pl.pallas_call(
        _chomp_copy_kernel,
        out_shape=jax.ShapeDtypeStruct((r, l_out), x.dtype),
        grid=grid,
        in_specs=[pl.BlockSpec((r_tile, l_tile), lambda i, j: (i, j))],
        out_specs=pl.BlockSpec((r_tile, l_tile), lambda i, j: (i, j)),
        compiler_params=pltpu.CompilerParams(
            dimension_semantics=("parallel", "parallel"),
        ),
    )(x2)

    return out2.reshape(n, c, l_out)


if __name__ == "__main__":
    key = jax.random.PRNGKey(0)

    # Small shapes consistent with a conv1d activation: (batch, channels, length)
    N, C, L = 2, 4, 16
    CHOMP = 3  # Chomp1d(chomp_size=3)

    x = jax.random.normal(key, (N, C, L), dtype=jnp.float32)
    out = jax.block_until_ready(chomp1d(x, CHOMP))

    ref = x[:, :, :-CHOMP]
    assert out.shape == (N, C, L - CHOMP), out.shape
    assert out.dtype == x.dtype
    assert jnp.array_equal(out, ref), "mismatch vs reference slice (small)"

    # Second check exercising multiple tiles and partial edge tiles (f32).
    key2 = jax.random.PRNGKey(1)
    N2, C2, L2, CHOMP2 = 4, 80, 3000, 50  # rows=320, L_out=2950 (>2048)
    x2 = jax.random.normal(key2, (N2, C2, L2), dtype=jnp.float32)
    out2 = jax.block_until_ready(chomp1d(x2, CHOMP2))
    assert out2.shape == (N2, C2, L2 - CHOMP2)
    assert jnp.array_equal(out2, x2[:, :, :-CHOMP2]), "mismatch vs reference slice (tiled f32)"

    # Third check: bf16 path (16-row sublane packing) with short L_out so the
    # row tile grows to fill the byte budget.
    key3 = jax.random.PRNGKey(2)
    N3, C3, L3, CHOMP3 = 8, 96, 200, 72  # rows=768, L_out=128
    x3 = jax.random.normal(key3, (N3, C3, L3), dtype=jnp.bfloat16)
    out3 = jax.block_until_ready(chomp1d(x3, CHOMP3))
    assert out3.shape == (N3, C3, L3 - CHOMP3)
    assert jnp.array_equal(out3, x3[:, :, :-CHOMP3]), "mismatch vs reference slice (bf16)"

    print("KERNEL_OK")
</pallas_src>

<mosaic_0001>
module attributes {stable_mosaic.version = 11 : i64} {
  func.func @_chomp_copy_kernel(%arg0: i32, %arg1: i32, %arg2: memref<8x128xf32, #tpu.memory_space<vmem>>, %arg3: memref<8x128xf32, #tpu.memory_space<vmem>>) attributes {dimension_semantics = [#tpu.dimension_semantics<parallel>, #tpu.dimension_semantics<parallel>], iteration_bounds = array<i64: 1, 1>, scalar_prefetch = 0 : i64, scratch_operands = 0 : i64, tpu.core_type = #tpu.core_type<tc>, window_params = [{transform_indices = @transform_0, window_bounds = array<i64: 8, 128>}, {transform_indices = @transform_1, window_bounds = array<i64: 8, 128>}]} {
    %c0 = arith.constant 0 : index
    %c0_0 = arith.constant 0 : index
    %0 = vector.load %arg2[%c0, %c0_0] : memref<8x128xf32, #tpu.memory_space<vmem>>, vector<8x128xf32>
    %c0_1 = arith.constant 0 : index
    %c0_2 = arith.constant 0 : index
    %1 = vector.load %arg3[%c0_1, %c0_2] : memref<8x128xf32, #tpu.memory_space<vmem>>, vector<8x128xf32>
    tpu.vector_store %arg3[%c0_1, %c0_2], %0 {strides = array<i32>} : memref<8x128xf32, #tpu.memory_space<vmem>>, vector<8x128xf32>,
    return
  }
  func.func @transform_0(%arg0: i32, %arg1: i32) -> (i32, i32) {
    %c0_i32 = arith.constant 0 : i32
    return %arg0, %arg1 : i32, i32
  }
  func.func @transform_1(%arg0: i32, %arg1: i32) -> (i32, i32) {
    %c0_i32 = arith.constant 0 : i32
    return %arg0, %arg1 : i32, i32
  }
}

</mosaic_0001>

<llo_original>
// kernel: tpu_custom_call.1
$region0: #{tpu_custom_call.1}
  #allocation0 [shape = 'u32[]', space=smem, size = 0x4, offset = 0x4, fixed_abs, tag = 'smem constant byte address 0x4 - core index']
  #allocation1 [shape = 'u32[144,128]{1,0:T(1,128)}', space=vmem, size = 0x12000, scoped, tag = 'internal scratch']
  %s0 = inlined_call_operand.hbm [shape: f32[8,16], index: 0, kind: input, shape index: {}]
  %s1 = inlined_call_operand.hbm [shape: f32[8,13], index: 1, kind: output, shape index: {}]
  %s2 = sld [smem:[#allocation0]]
  $region18: #{tpu_custom_call.1} parent=0
    _
  %s4 = ssub.s32 1, %s2
  %s5 = scalar_select 0, %s4, %s2
  $region1: #{tpu_custom_call.1} parent=0
    #allocation2 [shape = 'u8[4096]{0}', space=vmem, size = 0x1000, scoped, tag = 'input window, operand 0, single buffered']
    #allocation3 [shape = 's32[1]{0}', space=sflag, size = 0x4, scoped, tag = 'scoped memory for tpu_custom_call.1']
    #allocation4 [shape = 's32[1]{0}', space=sflag, size = 0x4, scoped, tag = 'scoped memory for tpu_custom_call.1']
    #allocation5 [shape = 'u8[4096]{0}', space=vmem, size = 0x1000, scoped, tag = 'output window, operand 0, single buffered']
    %6 = vsyncpa [#allocation3], 0
    %7 = vsyncpa [#allocation4], 0
    // Predicated region
    $region2: #{tpu_custom_call.1} parent=1 // pred_check
      _
    $region3: #{tpu_custom_call.1} parent=1 // pred_check_branch
      %9 = sbr.rel (0) target = $region5
    $region4: #{tpu_custom_call.1} parent=1 // pred_region
      %s11 = ssub.s32 128, 128
      %12 = vsyncadd [#allocation3], %s11
      %s14 = sshll.u32 [#allocation2], 4
      %s15 = int_to_ptr.vmem [resolvable:$true] %s14
      %17 = dma.hbm_to_vmem [thread:$0]  %s0, 128, %s15, [#allocation3]
    $region5: #{tpu_custom_call.1} parent=1 // pred_fallthru
      _
    // Predicated region
    $region6: #{tpu_custom_call.1} parent=1 // pred_check
      _
    $region7: #{tpu_custom_call.1} parent=1 // pred_check_branch
      %19 = sbr.rel (0) target = $region9
    $region8: #{tpu_custom_call.1} parent=1 // pred_region
      %20 = dma.done [#allocation3], 128
    $region9: #{tpu_custom_call.1} parent=1 // pred_fallthru
      _
    %v21 = vld [vmem:[#allocation2] sm:$0xff]
    %22 = vst [vmem:[#allocation5] sm:$0xff] %v21
    // Predicated region
    $region10: #{tpu_custom_call.1} parent=1 // pred_check
      _
    $region11: #{tpu_custom_call.1} parent=1 // pred_check_branch
      %24 = sbr.rel (0) target = $region13
    $region12: #{tpu_custom_call.1} parent=1 // pred_region
      %s26 = ssub.s32 128, 128
      %27 = vsyncadd [#allocation4], %s26
      %s29 = sshll.u32 [#allocation5], 4
      %s30 = int_to_ptr.vmem [resolvable:$true] %s29
      %32 = dma.vmem_to_hbm [thread:$0]  %s30, 128, %s1, [#allocation4]
    $region13: #{tpu_custom_call.1} parent=1 // pred_fallthru
      _
    // Predicated region
    $region14: #{tpu_custom_call.1} parent=1 // pred_check
      _
    $region15: #{tpu_custom_call.1} parent=1 // pred_check_branch
      %34 = sbr.rel (0) target = $region17
    $region16: #{tpu_custom_call.1} parent=1 // pred_region
      %35 = dma.done [#allocation4], 128
    $region17: #{tpu_custom_call.1} parent=1 // pred_fallthru
      _
    %36 = vsyncpa [#allocation3], 1
    %37 = vsyncpa [#allocation4], 1

</llo_original>
